<compile_context>
chip_gen: v7x
topology: tpu7x:2x2x1
jax: 0.10.0
libtpu: 0.0.40
codegen_flags: <defaults>
</compile_context>

<pallas_src>
from functools import partial

import jax
import jax.numpy as jnp
from jax.experimental import pallas as pl
from jax.experimental.pallas import tpu as pltpu


def _gem_kernel(pm_ref, x_ref, o_ref, *, gamma):
    # pm_ref: (OHOW_pad, HW)   resident 0/1 pooling matrix (constant across grid steps)
    # x_ref:  (block_c, HW)    flattened input rows (one row per (b, c))
    # o_ref:  (OHOW_pad, block_c) pooled output, transposed -> lane-dense stores
    x = x_ref[...].astype(jnp.float32)

    if gamma == 1:
        xp = x
    elif gamma == 2:
        xp = x * x
    elif gamma == 3:
        xp = x * x * x
    elif gamma == 4:
        x2 = x * x
        xp = x2 * x2
    else:
        xp = jnp.power(x, jnp.float32(gamma))

    # Single fused MXU matmul (A @ B^T pattern, like Q@K^T):
    #   s[o, c] = sum_k pm[o, k] * xp[c, k]
    s = jax.lax.dot_general(
        pm_ref[...], xp,
        dimension_numbers=(((1,), (1,)), ((), ())),
        preferred_element_type=jnp.float32,
    )

    if gamma == 1:
        r = s
    elif gamma == 2:
        r = jnp.sqrt(s)
    elif gamma == 4:
        r = jnp.sqrt(jnp.sqrt(s))
    else:
        r = jnp.power(s, jnp.float32(1.0 / gamma))

    o_ref[...] = r.astype(o_ref.dtype)


def _round_up(x, m):
    return ((x + m - 1) // m) * m


def gem_pool(x, gamma=2, kernel=(7, 7), block_c=None, interpret=False):
    """GEM pooling: x (B, C, H, W) -> (B, C, OH, OW), OH = (H-kh)//kh + 1, etc."""
    B, C, H, W = x.shape
    kh, kw = kernel
    assert H >= kh and W >= kw, "spatial dims smaller than pooling kernel"
    oh = (H - kh) // kh + 1
    ow = (W - kw) // kw + 1

    N = B * C
    HW = H * W
    OHOW = oh * ow
    OHOW_pad = max(8, _round_up(OHOW, 8))  # sublane-aligned matmul LHS / output rows

    itemsize = jnp.dtype(x.dtype).itemsize

    # Generation-aware VMEM budget (v5e/v6e: 128 MiB, v7x: 64 MiB per TC).
    try:
        vmem_cap = int(pltpu.get_tpu_info().vmem_capacity_bytes)
    except Exception:
        vmem_cap = 64 * 1024 * 1024  # conservative (v7x)
    budget = int(0.6 * vmem_cap)

    # VMEM bytes per channel-row of a block: double-buffered input tile, in-kernel f32
    # temporaries (x and x**gamma at 4 B/elem), double-buffered output column.
    per_c = 2 * HW * itemsize + 2 * HW * 4 + 2 * OHOW_pad * 4
    fixed = 2 * OHOW_pad * HW * 4  # resident pooling matrix

    if block_c is None:
        block_c = max(128, min(2048, ((budget - fixed) // per_c // 128) * 128))
    # Keep lane-dense output stores valid: block_c must be a multiple of 128.
    block_c = max(128, _round_up(int(block_c), 128))
    # Don't over-pad tiny problems.
    n_ceil = _round_up(max(N, 1), 128)
    block_c = min(block_c, n_ceil)
    # Prefer >= 2 grid steps when there is enough work (v7x has 2 TensorCores).
    if n_ceil // block_c < 2 and n_ceil >= 256:
        block_c = max(128, ((n_ceil // 2) // 128) * 128)

    n_pad = pl.cdiv(N, block_c) * block_c

    # Lane-dense input slab (reshape is a free view; only the row padding copies).
    xf = x.reshape(N, HW)
    if n_pad != N:
        xf = jnp.pad(xf, ((0, n_pad - N), (0, 0)))  # zero rows -> sliced off below

    # Fused pooling matrix over flattened pixels:
    #   pm[o, h*W + w] = 1  iff  h < oh*kh, w < ow*kw and (h//kh)*ow + (w//kw) == o
    # (rows OHOW..OHOW_pad-1 are all-zero padding).
    h_idx = jnp.arange(H)
    w_idx = jnp.arange(W)
    oh_of_h = jnp.where(h_idx < oh * kh, h_idx // kh, -1)
    ow_of_w = jnp.where(w_idx < ow * kw, w_idx // kw, -1)
    o_of_pixel = jnp.where(
        (oh_of_h[:, None] >= 0) & (ow_of_w[None, :] >= 0),
        oh_of_h[:, None] * ow + ow_of_w[None, :],
        -1,
    ).reshape(HW)
    pm_t = (o_of_pixel[None, :] == jnp.arange(OHOW_pad)[:, None]).astype(jnp.float32)

    # Explicit VMEM limit: actual tile footprint with headroom, capped below physical.
    est = fixed + per_c * block_c
    vmem_limit = int(max(16 * 1024 * 1024, min(int(0.75 * vmem_cap), 2 * est)))

    kernel_fn = partial(_gem_kernel, gamma=gamma)

    out = pl.pallas_call(
        kernel_fn,
        out_shape=jax.ShapeDtypeStruct((OHOW_pad, n_pad), x.dtype),
        grid_spec=pltpu.PrefetchScalarGridSpec(
            num_scalar_prefetch=0,
            grid=(n_pad // block_c,),
            in_specs=[
                pl.BlockSpec((OHOW_pad, HW), lambda n: (0, 0)),   # resident pooling matrix
                pl.BlockSpec((block_c, HW), lambda n: (n, 0)),    # input rows
            ],
            out_specs=pl.BlockSpec((OHOW_pad, block_c), lambda n: (0, n)),
        ),
        compiler_params=pltpu.CompilerParams(
            dimension_semantics=("parallel",),
            vmem_limit_bytes=vmem_limit,
        ),
        interpret=interpret,
    )(pm_t, xf)

    # (OHOW_pad, n_pad) -> (N, OHOW) -> (B, C, oh, ow). Tiny wrapper-side transpose.
    y = out[:OHOW, :N].T.reshape(B, C, oh, ow)
    return y


def _reference(x, gamma=2, kernel=(7, 7)):
    B, C, H, W = x.shape
    kh, kw = kernel
    oh = (H - kh) // kh + 1
    ow = (W - kw) // kw + 1
    xp = jnp.power(x.astype(jnp.float32), float(gamma))
    xp = xp[:, :, : oh * kh, : ow * kw].reshape(B, C, oh, kh, ow, kw)
    s = xp.sum(axis=(3, 5))
    return jnp.power(s, 1.0 / float(gamma)).astype(x.dtype)


if __name__ == "__main__":
    key = jax.random.PRNGKey(0)
    # (batch=2, channels=4, spatial=16x16) -> GEM(gamma=2, kernel=(7,7)) -> (2, 4, 2, 2)
    x = jax.random.normal(key, (2, 4, 16, 16), dtype=jnp.float32)

    y = gem_pool(x, gamma=2, kernel=(7, 7))
    jax.block_until_ready(y)

    y_ref = _reference(x, gamma=2, kernel=(7, 7))
    assert y.shape == (2, 4, 2, 2), f"bad output shape {y.shape}"
    assert jnp.allclose(y, y_ref, atol=1e-5, rtol=1e-5), "GEM pooling mismatch"

    print("KERNEL_OK")
</pallas_src>

<mosaic_0001>
module attributes {stable_mosaic.version = 11 : i64} {
  func.func @_gem_kernel(%arg0: i32, %arg1: memref<8x256xf32, #tpu.memory_space<vmem>>, %arg2: memref<128x256xf32, #tpu.memory_space<vmem>>, %arg3: memref<8x128xf32, #tpu.memory_space<vmem>>) attributes {dimension_semantics = [#tpu.dimension_semantics<parallel>], iteration_bounds = array<i64: 1>, scalar_prefetch = 0 : i64, scratch_operands = 0 : i64, tpu.core_type = #tpu.core_type<tc>, window_params = [{pipeline_mode = #tpu.pipeline_mode<synchronous>, transform_indices = @transform_0, window_bounds = array<i64: 8, 256>}, {transform_indices = @transform_1, window_bounds = array<i64: 128, 256>}, {transform_indices = @transform_2, window_bounds = array<i64: 8, 128>}]} {
    %c0 = arith.constant 0 : index
    %c0_0 = arith.constant 0 : index
    %0 = vector.load %arg2[%c0, %c0_0] : memref<128x256xf32, #tpu.memory_space<vmem>>, vector<128x256xf32>
    %1 = arith.mulf %0, %0 : vector<128x256xf32>
    %c0_1 = arith.constant 0 : index
    %c0_2 = arith.constant 0 : index
    %2 = vector.load %arg1[%c0_1, %c0_2] : memref<8x256xf32, #tpu.memory_space<vmem>>, vector<8x256xf32>
    %cst = arith.constant dense<0.000000e+00> : vector<8x128xf32>
    %3 = tpu.matmul %2, %1, %cst {dimension_numbers = #tpu.dot_dimension_numbers<[1], [1], [0], [0], [0, 0, 1, 0], [], []>} : vector<8x256xf32>, vector<128x256xf32>, vector<8x128xf32> -> vector<8x128xf32>
    %4 = math.sqrt %3 : vector<8x128xf32>
    %c0_3 = arith.constant 0 : index
    %c0_4 = arith.constant 0 : index
    %5 = vector.load %arg3[%c0_3, %c0_4] : memref<8x128xf32, #tpu.memory_space<vmem>>, vector<8x128xf32>
    tpu.vector_store %arg3[%c0_3, %c0_4], %4 {strides = array<i32>} : memref<8x128xf32, #tpu.memory_space<vmem>>, vector<8x128xf32>,
    return
  }
  func.func @transform_0(%arg0: i32) -> (i32, i32) {
    %c0_i32 = arith.constant 0 : i32
    %c0_i32_0 = arith.constant 0 : i32
    %c0_i32_1 = arith.constant 0 : i32
    return %c0_i32, %c0_i32_0 : i32, i32
  }
  func.func @transform_1(%arg0: i32) -> (i32, i32) {
    %c0_i32 = arith.constant 0 : i32
    %c0_i32_0 = arith.constant 0 : i32
    return %arg0, %c0_i32 : i32, i32
  }
  func.func @transform_2(%arg0: i32) -> (i32, i32) {
    %c0_i32 = arith.constant 0 : i32
    %c0_i32_0 = arith.constant 0 : i32
    return %c0_i32, %arg0 : i32, i32
  }
}

</mosaic_0001>

<llo_original>
// kernel: tpu_custom_call.1
$region0: #{tpu_custom_call.1}
  #allocation0 [shape = 'u32[]', space=smem, size = 0x4, offset = 0x4, fixed_abs, tag = 'smem constant byte address 0x4 - core index']
  #allocation1 [shape = 'u32[144,128]{1,0:T(1,128)}', space=vmem, size = 0x12000, scoped, tag = 'internal scratch']
  %s0 = inlined_call_operand.hbm [shape: f32[8,256], index: 0, kind: input, shape index: {}]
  %s1 = inlined_call_operand.hbm [shape: f32[128,256], index: 1, kind: input, shape index: {}]
  %s2 = inlined_call_operand.hbm [shape: f32[8,128], index: 2, kind: output, shape index: {}]
  %s3 = sld [smem:[#allocation0]]
  $region26: #{tpu_custom_call.1} parent=0
    _
  %s5 = ssub.s32 1, %s3
  %s6 = scalar_select 0, %s5, %s3
  $region1: #{tpu_custom_call.1} parent=0
    #allocation2 [shape = 'u8[8192]{0}', space=vmem, size = 0x2000, scoped, tag = 'input window, operand 0, single buffered']
    #allocation3 [shape = 's32[1]{0}', space=sflag, size = 0x4, scoped, tag = 'scoped memory for tpu_custom_call.1']
    #allocation4 [shape = 's32[1]{0}', space=sflag, size = 0x4, scoped, tag = 'scoped memory for tpu_custom_call.1']
    #allocation5 [shape = 'u8[131072]{0}', space=vmem, size = 0x20000, scoped, tag = 'input window, operand 1, single buffered']
    #allocation6 [shape = 's32[1]{0}', space=sflag, size = 0x4, scoped, tag = 'scoped memory for tpu_custom_call.1']
    #allocation7 [shape = 'u8[4096]{0}', space=vmem, size = 0x1000, scoped, tag = 'output window, operand 0, single buffered']
    %7 = vsyncpa [#allocation3], 0
    %8 = vsyncpa [#allocation6], 0
    %9 = vsyncpa [#allocation4], 0
    // Predicated region
    $region2: #{tpu_custom_call.1} parent=1 // pred_check
      _
    $region3: #{tpu_custom_call.1} parent=1 // pred_check_branch
      %11 = sbr.rel (0) target = $region5
    $region4: #{tpu_custom_call.1} parent=1 // pred_region
      %s13 = ssub.s32 256, 256
      %14 = vsyncadd [#allocation3], %s13
      %s16 = sshll.u32 [#allocation2], 4
      %s17 = int_to_ptr.vmem [resolvable:$true] %s16
      %19 = dma.hbm_to_vmem [thread:$0]  %s0, 256, %s17, [#allocation3]
    $region5: #{tpu_custom_call.1} parent=1 // pred_fallthru
      _
    // Predicated region
    $region6: #{tpu_custom_call.1} parent=1 // pred_check
      _
    $region7: #{tpu_custom_call.1} parent=1 // pred_check_branch
      %21 = sbr.rel (0) target = $region9
    $region8: #{tpu_custom_call.1} parent=1 // pred_region
      %s23 = ssub.s32 4096, 4096
      %24 = vsyncadd [#allocation6], %s23
      %s25 = sshll.u32 [#allocation5], 4
      %s26 = int_to_ptr.vmem [resolvable:$true] %s25
      %31 = dma.hbm_to_vmem [thread:$0]  %s1, 4096, %s26, [#allocation6], 256, 256, 16
    $region9: #{tpu_custom_call.1} parent=1 // pred_fallthru
      _
    // Predicated region
    $region10: #{tpu_custom_call.1} parent=1 // pred_check
      _
    $region11: #{tpu_custom_call.1} parent=1 // pred_check_branch
      %33 = sbr.rel (0) target = $region13
    $region12: #{tpu_custom_call.1} parent=1 // pred_region
      %34 = dma.done [#allocation3], 256
    $region13: #{tpu_custom_call.1} parent=1 // pred_fallthru
      _
    // Predicated region
    $region14: #{tpu_custom_call.1} parent=1 // pred_check
      _
    $region15: #{tpu_custom_call.1} parent=1 // pred_check_branch
      %36 = sbr.rel (0) target = $region17
    $region16: #{tpu_custom_call.1} parent=1 // pred_region
      %37 = dma.done [#allocation6], 4096
    $region17: #{tpu_custom_call.1} parent=1 // pred_fallthru
      _
    %v38 = vld [vmem:[#allocation5] sm:$0xff]
    %v39 = vld [vmem:[#allocation5 + $0x8] sm:$0xff]
    %v40 = vld [vmem:[#allocation5 + $0x10] sm:$0xff]
    %v41 = vld [vmem:[#allocation5 + $0x18] sm:$0xff]
    %v42 = vld [vmem:[#allocation5 + $0x20] sm:$0xff]
    %v43 = vld [vmem:[#allocation5 + $0x28] sm:$0xff]
    %v44 = vld [vmem:[#allocation5 + $0x30] sm:$0xff]
    %v45 = vld [vmem:[#allocation5 + $0x38] sm:$0xff]
    %v46 = vld [vmem:[#allocation5 + $0x40] sm:$0xff]
    %v47 = vld [vmem:[#allocation5 + $0x48] sm:$0xff]
    %v48 = vld [vmem:[#allocation5 + $0x50] sm:$0xff]
    %v49 = vld [vmem:[#allocation5 + $0x58] sm:$0xff]
    %v50 = vld [vmem:[#allocation5 + $0x60] sm:$0xff]
    %v51 = vld [vmem:[#allocation5 + $0x68] sm:$0xff]
    %v52 = vld [vmem:[#allocation5 + $0x70] sm:$0xff]
    %v53 = vld [vmem:[#allocation5 + $0x78] sm:$0xff]
    %v54 = vld [vmem:[#allocation5 + $0x80] sm:$0xff]
    %v55 = vld [vmem:[#allocation5 + $0x88] sm:$0xff]
    %v56 = vld [vmem:[#allocation5 + $0x90] sm:$0xff]
    %v57 = vld [vmem:[#allocation5 + $0x98] sm:$0xff]
    %v58 = vld [vmem:[#allocation5 + $0xa0] sm:$0xff]
    %v59 = vld [vmem:[#allocation5 + $0xa8] sm:$0xff]
    %v60 = vld [vmem:[#allocation5 + $0xb0] sm:$0xff]
    %v61 = vld [vmem:[#allocation5 + $0xb8] sm:$0xff]
    %v62 = vld [vmem:[#allocation5 + $0xc0] sm:$0xff]
    %v63 = vld [vmem:[#allocation5 + $0xc8] sm:$0xff]
    %v64 = vld [vmem:[#allocation5 + $0xd0] sm:$0xff]
    %v65 = vld [vmem:[#allocation5 + $0xd8] sm:$0xff]
    %v66 = vld [vmem:[#allocation5 + $0xe0] sm:$0xff]
    %v67 = vld [vmem:[#allocation5 + $0xe8] sm:$0xff]
    %v68 = vld [vmem:[#allocation5 + $0xf0] sm:$0xff]
    %v69 = vld [vmem:[#allocation5 + $0xf8] sm:$0xff]
    %v70 = vmul.f32 %v38, %v38
    %v71 = vmul.f32 %v39, %v39
    %v72 = vmul.f32 %v40, %v40
    %v73 = vmul.f32 %v41, %v41
    %v74 = vmul.f32 %v42, %v42
    %v75 = vmul.f32 %v43, %v43
    %v76 = vmul.f32 %v44, %v44
    %v77 = vmul.f32 %v45, %v45
    %v78 = vmul.f32 %v46, %v46
    %v79 = vmul.f32 %v47, %v47
    %v80 = vmul.f32 %v48, %v48
    %v81 = vmul.f32 %v49, %v49
    %v82 = vmul.f32 %v50, %v50
    %v83 = vmul.f32 %v51, %v51
    %v84 = vmul.f32 %v52, %v52
    %v85 = vmul.f32 %v53, %v53
    %v86 = vmul.f32 %v54, %v54
    %v87 = vmul.f32 %v55, %v55
    %v88 = vmul.f32 %v56, %v56
    %v89 = vmul.f32 %v57, %v57
    %v90 = vmul.f32 %v58, %v58
    %v91 = vmul.f32 %v59, %v59
    %v92 = vmul.f32 %v60, %v60
    %v93 = vmul.f32 %v61, %v61
    %v94 = vmul.f32 %v62, %v62
    %v95 = vmul.f32 %v63, %v63
    %v96 = vmul.f32 %v64, %v64
    %v97 = vmul.f32 %v65, %v65
    %v98 = vmul.f32 %v66, %v66
    %v99 = vmul.f32 %v67, %v67
    %v100 = vmul.f32 %v68, %v68
    %v101 = vmul.f32 %v69, %v69
    %v102 = vld [vmem:[#allocation2] sm:$0xff]
    %v103 = vld [vmem:[#allocation2 + $0x8] sm:$0xff]
    %104 = vmatprep.subr.mxu0 %v71
    %105 = vmatpush1.xpose.msra.mxu0 %v70
    %106 = vmatprep.subr.mxu0 %v73
    %107 = vmatpush1.xpose.msra.mxu0 %v72
    %108 = vmatprep.subr.mxu0 %v75
    %109 = vmatpush1.xpose.msra.mxu0 %v74
    %110 = vmatprep.subr.mxu0 %v77
    %111 = vmatpush1.xpose.msra.mxu0 %v76
    %112 = vmatprep.subr.mxu0 %v79
    %113 = vmatpush1.xpose.msra.mxu0 %v78
    %114 = vmatprep.subr.mxu0 %v81
    %115 = vmatpush1.xpose.msra.mxu0 %v80
    %116 = vmatprep.subr.mxu0 %v83
    %117 = vmatpush1.xpose.msra.mxu0 %v82
    %118 = vmatprep.subr.mxu0 %v85
    %119 = vmatpush1.xpose.msra.mxu0 %v84
    %120 = vmatprep.subr.mxu0 %v87
    %121 = vmatpush1.xpose.msra.mxu0 %v86
    %122 = vmatprep.subr.mxu0 %v89
    %123 = vmatpush1.xpose.msra.mxu0 %v88
    %124 = vmatprep.subr.mxu0 %v91
    %125 = vmatpush1.xpose.msra.mxu0 %v90
    %126 = vmatprep.subr.mxu0 %v93
    %127 = vmatpush1.xpose.msra.mxu0 %v92
    %128 = vmatprep.subr.mxu0 %v95
    %129 = vmatpush1.xpose.msra.mxu0 %v94
    %130 = vmatprep.subr.mxu0 %v97
    %131 = vmatpush1.xpose.msra.mxu0 %v96
    %132 = vmatprep.subr.mxu0 %v99
    %133 = vmatpush1.xpose.msra.mxu0 %v98
    %134 = vmatprep.subr.mxu0 %v101
    %135 = vmatpush1.xpose.msra.mxu0 %v100
    %136 = vmatprep.subr.mxu0 0.0
    %137 = vmatpush1.xpose.msra.mxu0 0.0
    %138 = vmatprep.subr.mxu0 0.0
    %139 = vmatpush1.xpose.msra.mxu0 0.0
    %140 = vmatprep.subr.mxu0 0.0
    %141 = vmatpush1.xpose.msra.mxu0 0.0
    %142 = vmatprep.subr.mxu0 0.0
    %143 = vmatpush1.xpose.msra.mxu0 0.0
    %144 = vmatprep.subr.mxu0 0.0
    %145 = vmatpush1.xpose.msra.mxu0 0.0
    %146 = vmatprep.subr.mxu0 0.0
    %147 = vmatpush1.xpose.msra.mxu0 0.0
    %148 = vmatprep.subr.mxu0 0.0
    %149 = vmatpush1.xpose.msra.mxu0 0.0
    %150 = vmatprep.subr.mxu0 0.0
    %151 = vmatpush1.xpose.msra.mxu0 0.0
    %152 = vmatprep.subr.mxu0 0.0
    %153 = vmatpush1.xpose.msra.mxu0 0.0
    %154 = vmatprep.subr.mxu0 0.0
    %155 = vmatpush1.xpose.msra.mxu0 0.0
    %156 = vmatprep.subr.mxu0 0.0
    %157 = vmatpush1.xpose.msra.mxu0 0.0
    %158 = vmatprep.subr.mxu0 0.0
    %159 = vmatpush1.xpose.msra.mxu0 0.0
    %160 = vmatprep.subr.mxu0 0.0
    %161 = vmatpush1.xpose.msra.mxu0 0.0
    %162 = vmatprep.subr.mxu0 0.0
    %163 = vmatpush1.xpose.msra.mxu0 0.0
    %164 = vmatprep.subr.mxu0 0.0
    %165 = vmatpush1.xpose.msra.mxu0 0.0
    %166 = vmatprep.subr.mxu0 0.0
    %167 = vmatpush1.xpose.msra.mxu0 0.0
    %168 = vmatprep.mubr.f32.mxu0 %v103
    %169 = vmatmul.mubr.f32.gmra.mrb[0].mxu0 %v102
    %v170 = vpop.f32.mrb[0].mxu0
    %v171 = vadd.f32 0.0, %v170
    %v172 = vpop.f32.mrb[0].mxu0
    %173 = vdwg.mxu0
    %v174 = vrsqrt.pop %v171
    %v175 = vmul.f32 %v171, %v174
    %vm176 = vcmp.eq.f32.partialorder %v171, inf
    %v177 = vsel %vm176, %v171, %v175
    %vm178 = vcmp.eq.f32.partialorder %v171, 0.0
    %v179 = vand.u32 %v171, 2147483648
    %v180 = vsel %vm178, %v179, %v177
    %181 = vst [vmem:[#allocation7] sm:$0xff] %v180
    // Predicated region
    $region18: #{tpu_custom_call.1} parent=1 // pred_check
      _
    $region19: #{tpu_custom_call.1} parent=1 // pred_check_branch
      %183 = sbr.rel (0) target = $region21
    $region20: #{tpu_custom_call.1} parent=1 // pred_region
      %s185 = ssub.s32 128, 128
      %186 = vsyncadd [#allocation4], %s185
      %s188 = sshll.u32 [#allocation7], 4
      %s189 = int_to_ptr.vmem [resolvable:$true] %s188
      %191 = dma.vmem_to_hbm [thread:$0]  %s189, 128, %s2, [#allocation4]
    $region21: #{tpu_custom_call.1} parent=1 // pred_fallthru
      _
    // Predicated region
    $region22: #{tpu_custom_call.1} parent=1 // pred_check
      _
    $region23: #{tpu_custom_call.1} parent=1 // pred_check_branch
      %193 = sbr.rel (0) target = $region25
    $region24: #{tpu_custom_call.1} parent=1 // pred_region
      %194 = dma.done [#allocation4], 128
    $region25: #{tpu_custom_call.1} parent=1 // pred_fallthru
      _
    %195 = vsyncpa [#allocation3], 1
    %196 = vsyncpa [#allocation6], 1
    %197 = vsyncpa [#allocation4], 1

</llo_original>
